<compile_context>
chip_gen: v5e
topology: v5e:2x2
jax: 0.10.0
libtpu: 0.0.40
codegen_flags: <defaults>
</compile_context>

<pallas_src>
import functools

import jax
import jax.numpy as jnp
import numpy as np
from jax.experimental import pallas as pl
from jax.experimental.pallas import tpu as pltpu


# ----------------------------------------------------------------------------
# Pallas kernel factory: whole residual block for ONE batch element.
# ----------------------------------------------------------------------------
def _make_kernel(L, L2, Cin, Cout, stride, has_downsample):
    K = 3  # every conv is kernel_size=3 (dilations 1 / 2 / 4)

    def kernel(*refs):
        if has_downsample:
            (x_ref, w1_ref, w2_ref, w3_ref, b1_ref, b2_ref, b3_ref,
             wd_ref, bd_ref, o_ref, pad1, pad2, pad3) = refs
        else:
            (x_ref, w1_ref, w2_ref, w3_ref, b1_ref, b2_ref, b3_ref,
             o_ref, pad1, pad2, pad3) = refs

        x = x_ref[...]                         # (L, Cin), caller dtype
        x_p1 = x.astype(pad1.dtype)

        # ---- conv1: k=3, d=1, s=1, pad=1 -> BN(bias) -> ReLU ----------------
        # Halo rows are re-zeroed every step (cheap) so the kernel stays
        # correct when the "parallel" batch axis is sharded across cores.
        pad1[0:1, :] = jnp.zeros((1, Cin), pad1.dtype)
        pad1[L + 1:L + 2, :] = jnp.zeros((1, Cin), pad1.dtype)
        pad1[1:1 + L, :] = x_p1

        if stride == 2:
            # conv2 (d=2, s=2) only ever reads even rows of out1, so conv1 is
            # evaluated only at those L2 rows (strided f32 reads of pad1).
            taps1 = [pad1[pl.ds(k, L2, stride=2), :] for k in range(K)]
        else:
            taps1 = [pad1[k:k + L, :] for k in range(K)]
        t1 = jnp.concatenate(taps1, axis=-1)
        acc1 = jnp.dot(t1.astype(jnp.bfloat16), w1_ref[...],
                       preferred_element_type=jnp.float32)
        out1 = jnp.maximum(acc1 + b1_ref[...], 0.0)       # f32

        # ---- conv2: k=3, d=2, s=stride, pad=2 -> BN(bias) -> ReLU -----------
        if stride == 2:
            # pad2 holds only the even rows of out1 (+1 zero halo row each
            # side); the im2col taps are unit-stride.
            pad2[0:1, :] = jnp.zeros((1, Cout), pad2.dtype)
            pad2[L2 + 1:L2 + 2, :] = jnp.zeros((1, Cout), pad2.dtype)
            pad2[1:1 + L2, :] = out1.astype(pad2.dtype)
            taps2 = [pad2[k:k + L2, :] for k in range(K)]
        else:
            pad2[0:2, :] = jnp.zeros((2, Cout), pad2.dtype)
            pad2[L + 2:L + 4, :] = jnp.zeros((2, Cout), pad2.dtype)
            pad2[2:2 + L, :] = out1.astype(pad2.dtype)
            if stride == 1:
                taps2 = [pad2[2 * k:2 * k + L2, :] for k in range(K)]
            else:  # generic stride fallback (rarely used)
                taps2 = [pad2[pl.ds(2 * k, L2, stride=stride), :]
                         for k in range(K)]
        t2 = jnp.concatenate(taps2, axis=-1)
        acc2 = jnp.dot(t2.astype(jnp.bfloat16), w2_ref[...],
                       preferred_element_type=jnp.float32)
        out2 = jnp.maximum(acc2 + b2_ref[...], 0.0)       # (L2, Cout) f32

        # ---- conv3: k=3, d=4, s=1, pad=4 -> BN(bias), no ReLU ---------------
        pad3[0:4, :] = jnp.zeros((4, Cout), pad3.dtype)
        pad3[L2 + 4:L2 + 8, :] = jnp.zeros((4, Cout), pad3.dtype)
        pad3[4:4 + L2, :] = out2.astype(pad3.dtype)
        t3 = jnp.concatenate([pad3[4 * k:4 * k + L2, :] for k in range(K)],
                             axis=-1)
        acc3 = jnp.dot(t3.astype(jnp.bfloat16), w3_ref[...],
                       preferred_element_type=jnp.float32)
        out3 = acc3 + b3_ref[...]

        # ---- residual path --------------------------------------------------
        if has_downsample:
            if stride == 1:
                x_s = x_p1                                  # (L, Cin), bf16
            else:
                # x[j*stride] == pad1[1 + j*stride]   (pad1 is f32 here)
                x_s = pad1[pl.ds(1, L2, stride=stride), :]
            resid = jnp.dot(x_s.astype(jnp.bfloat16), wd_ref[...],
                            preferred_element_type=jnp.float32) + bd_ref[...]
        else:
            # identity: stride==1 and Cin==Cout, so L2==L and shapes match.
            resid = x.astype(jnp.float32)

        o_ref[...] = jnp.maximum(out3 + resid, 0.0).astype(o_ref.dtype)

    return kernel


# ----------------------------------------------------------------------------
# Channels-last entry point: x is (B, L, Cin), output is (B, L2, Cout).
# Keeps the caller's activation dtype (f32 or bf16) for HBM in/out.
# ----------------------------------------------------------------------------
def residual_block_dilated_cl(x_blc, params, stride, out_dtype=None):
    if x_blc.dtype not in (jnp.float32, jnp.bfloat16):
        x_blc = x_blc.astype(jnp.float32)
    out_dtype = x_blc.dtype if out_dtype is None else np.dtype(out_dtype)

    B, L, Cin = x_blc.shape
    Cout = params["w1"].shape[0]
    L2 = (L - 1) // stride + 1
    eps = 1e-5
    has_downsample = (stride != 1) or (Cin != Cout)

    def fold(w, g, gb, m, v):
        # torch weight (Cout, Cin_w, K) -> im2col weight (K*Cin_w, Cout) with
        # the BN scale folded into the output channels; BN shift stays a bias.
        scale = g / jnp.sqrt(v + eps)
        bias = gb - m * scale
        w_kio = jnp.transpose(w, (2, 1, 0)) * scale[None, None, :]
        Kk, Ci, Co = w_kio.shape
        return (w_kio.reshape(Kk * Ci, Co).astype(jnp.bfloat16),
                bias.reshape(1, Co).astype(jnp.float32))

    w1, b1 = fold(params["w1"], params["bn1_g"], params["bn1_b"],
                  params["bn1_m"], params["bn1_v"])
    w2, b2 = fold(params["w2"], params["bn2_g"], params["bn2_b"],
                  params["bn2_m"], params["bn2_v"])
    w3, b3 = fold(params["w3"], params["bn3_g"], params["bn3_b"],
                  params["bn3_m"], params["bn3_v"])

    const2d = lambda shape: pl.BlockSpec(shape, lambda b: (0, 0))
    in_specs = [
        pl.BlockSpec((None, L, Cin), lambda b: (b, 0, 0)),      # x -> (L, Cin)
        const2d((3 * Cin, Cout)),                               # w1 (im2col)
        const2d((3 * Cout, Cout)),                              # w2 (im2col)
        const2d((3 * Cout, Cout)),                              # w3 (im2col)
        const2d((1, Cout)), const2d((1, Cout)), const2d((1, Cout)),
    ]
    args = [x_blc, w1, w2, w3, b1, b2, b3]

    if has_downsample:
        wd, bd = fold(params["wd"], params["bnd_g"], params["bnd_b"],
                      params["bnd_m"], params["bnd_v"])
        in_specs += [const2d((Cin, Cout)), const2d((1, Cout))]  # wd, bd
        args += [wd, bd]

    # Scratch: strided (pl.ds stride=) reads stay on f32 refs; refs that are
    # only read with unit-stride shifted slices are bf16 (half the VMEM and
    # half the slab-build load/store traffic).
    pad1_dtype = jnp.bfloat16 if stride == 1 else jnp.float32
    pad2_dtype = jnp.bfloat16 if stride <= 2 else jnp.float32
    pad1_rows = L + 2
    pad2_rows = (L2 + 2) if stride == 2 else (L + 4)
    pad3_rows = L2 + 8
    scratch_shapes = [
        pltpu.VMEM((pad1_rows, Cin), pad1_dtype),    # conv1 padded input
        pltpu.VMEM((pad2_rows, Cout), pad2_dtype),   # conv2 padded input
        pltpu.VMEM((pad3_rows, Cout), jnp.bfloat16), # conv3 padded input
    ]

    # Advisory cost estimate (helps XLA schedule surrounding ops, e.g. the
    # NCL transposes in the PyTorch-interface wrapper).
    l1_rows = L2 if stride == 2 else L
    flops = 2 * B * (l1_rows * 3 * Cin * Cout + 2 * L2 * 3 * Cout * Cout)
    weight_bytes = int(w1.size + w2.size + w3.size) * 2 + 3 * Cout * 4
    if has_downsample:
        flops += 2 * B * L2 * Cin * Cout
        weight_bytes += int(wd.size) * 2 + Cout * 4
    x_bytes = B * L * Cin * np.dtype(x_blc.dtype).itemsize
    o_bytes = B * L2 * Cout * np.dtype(out_dtype).itemsize
    cost = pl.CostEstimate(flops=int(flops), transcendentals=0,
                           bytes_accessed=int(x_bytes + o_bytes + weight_bytes))

    # Per-grid-step VMEM: scratch + double-buffered x/out blocks + weights.
    scratch_bytes = (pad1_rows * Cin * np.dtype(pad1_dtype).itemsize
                     + pad2_rows * Cout * np.dtype(pad2_dtype).itemsize
                     + pad3_rows * Cout * 2)
    block_bytes = 2 * (L * Cin * np.dtype(x_blc.dtype).itemsize
                       + L2 * Cout * np.dtype(out_dtype).itemsize)
    needed = scratch_bytes + block_bytes + 2 * weight_bytes
    # Raise the scoped limit above the 32 MiB default when needed; cap at the
    # v7x per-core physical VMEM.  TODO(synk): switch to an L-tiled grid (with
    # halo DMA) instead of raising the limit once working sets approach 64 MiB.
    vmem_limit = int(min(64 * 1024 * 1024,
                         max(32 * 1024 * 1024, int(needed * 1.5))))

    kernel = _make_kernel(L, L2, Cin, Cout, stride, has_downsample)

    out = pl.pallas_call(
        kernel,
        out_shape=jax.ShapeDtypeStruct((B, L2, Cout), out_dtype),
        grid_spec=pltpu.PrefetchScalarGridSpec(
            num_scalar_prefetch=0,
            grid=(B,),
            in_specs=in_specs,
            out_specs=pl.BlockSpec((None, L2, Cout), lambda b: (b, 0, 0)),
            scratch_shapes=scratch_shapes,
        ),
        compiler_params=pltpu.CompilerParams(
            dimension_semantics=("parallel",),
            vmem_limit_bytes=vmem_limit,
        ),
        cost_estimate=cost,
    )(*args)
    return out


# ----------------------------------------------------------------------------
# PyTorch-interface wrapper (NCL in / NCL out).  Stacked blocks should stay
# channels-last (and bf16) and call residual_block_dilated_cl directly.
# ----------------------------------------------------------------------------
def residual_block_dilated(x_ncl, params, stride):
    out = residual_block_dilated_cl(jnp.transpose(x_ncl, (0, 2, 1)),
                                    params, stride)
    return jnp.transpose(out, (0, 2, 1))   # (B, Cout, L2)


# ----------------------------------------------------------------------------
# Pure-JAX reference (eval-mode BN), for correctness check.
# ----------------------------------------------------------------------------
def residual_block_ref(x_ncl, params, stride):
    eps = 1e-5
    Cin = x_ncl.shape[1]
    Cout = params["w1"].shape[0]

    def conv(x, w, s, pad, dil):
        return jax.lax.conv_general_dilated(
            x, w, (s,), [(pad, pad)], rhs_dilation=(dil,),
            dimension_numbers=("NCH", "OIH", "NCH"))

    def bn(x, g, b, m, v):
        return ((x - m[None, :, None]) / jnp.sqrt(v[None, :, None] + eps)
                * g[None, :, None] + b[None, :, None])

    out = jax.nn.relu(bn(conv(x_ncl, params["w1"], 1, 1, 1),
                         params["bn1_g"], params["bn1_b"],
                         params["bn1_m"], params["bn1_v"]))
    out = jax.nn.relu(bn(conv(out, params["w2"], stride, 2, 2),
                         params["bn2_g"], params["bn2_b"],
                         params["bn2_m"], params["bn2_v"]))
    out = bn(conv(out, params["w3"], 1, 4, 4),
             params["bn3_g"], params["bn3_b"],
             params["bn3_m"], params["bn3_v"])
    if stride != 1 or Cin != Cout:
        residual = bn(conv(x_ncl, params["wd"], stride, 0, 1),
                      params["bnd_g"], params["bnd_b"],
                      params["bnd_m"], params["bnd_v"])
    else:
        residual = x_ncl
    return jax.nn.relu(out + residual)


# ----------------------------------------------------------------------------
def make_params(key, cin, cout):
    ks = jax.random.split(key, 20)
    p = {}
    p["w1"] = 0.1 * jax.random.normal(ks[0], (cout, cin, 3), jnp.float32)
    p["w2"] = 0.1 * jax.random.normal(ks[1], (cout, cout, 3), jnp.float32)
    p["w3"] = 0.1 * jax.random.normal(ks[2], (cout, cout, 3), jnp.float32)
    p["wd"] = 0.1 * jax.random.normal(ks[3], (cout, cin, 1), jnp.float32)
    for i, name in enumerate(["bn1", "bn2", "bn3", "bnd"]):
        p[f"{name}_g"] = 1.0 + 0.1 * jax.random.normal(ks[4 + i], (cout,), jnp.float32)
        p[f"{name}_b"] = 0.1 * jax.random.normal(ks[8 + i], (cout,), jnp.float32)
        p[f"{name}_m"] = 0.1 * jax.random.normal(ks[12 + i], (cout,), jnp.float32)
        p[f"{name}_v"] = 0.5 + jnp.abs(0.3 * jax.random.normal(ks[16 + i], (cout,), jnp.float32))
    return p


if __name__ == "__main__":
    key = jax.random.PRNGKey(0)
    k1x, k1p, k2x, k2p, k3x, k3p = jax.random.split(key, 6)

    # bf16 matmul operands + folded BN scales -> slightly wider tolerance.
    TOL = dict(rtol=5e-2, atol=5e-2)

    # ---- case 1: downsample path (stride=2, Cin != Cout) --------------------
    B, Cin, Cout, L, stride = 2, 4, 8, 16, 2
    x1 = jax.random.normal(k1x, (B, Cin, L), jnp.float32)      # NCL like PyTorch
    p1 = make_params(k1p, Cin, Cout)
    fwd1 = jax.jit(functools.partial(residual_block_dilated, stride=stride))
    out1 = jax.block_until_ready(fwd1(x1, p1))
    ref1 = residual_block_ref(x1, p1, stride)
    np.testing.assert_allclose(np.asarray(out1), np.asarray(ref1), **TOL)

    # ---- case 2: identity residual (stride=1, Cin == Cout) ------------------
    B2, C2, L2s, s2 = 2, 8, 16, 1
    x2 = jax.random.normal(k2x, (B2, C2, L2s), jnp.float32)
    p2 = make_params(k2p, C2, C2)
    fwd2 = jax.jit(functools.partial(residual_block_dilated, stride=s2))
    out2 = jax.block_until_ready(fwd2(x2, p2))
    ref2 = residual_block_ref(x2, p2, s2)
    np.testing.assert_allclose(np.asarray(out2), np.asarray(ref2), **TOL)

    # ---- case 3: channel projection only (stride=1, Cin != Cout) ------------
    B3, Cin3, Cout3, L3, s3 = 2, 4, 8, 16, 1
    x3 = jax.random.normal(k3x, (B3, Cin3, L3), jnp.float32)
    p3 = make_params(k3p, Cin3, Cout3)
    fwd3 = jax.jit(functools.partial(residual_block_dilated, stride=s3))
    out3 = jax.block_until_ready(fwd3(x3, p3))
    ref3 = residual_block_ref(x3, p3, s3)
    np.testing.assert_allclose(np.asarray(out3), np.asarray(ref3), **TOL)

    # ---- case 4: bf16 activations in / bf16 out (channels-last entry) -------
    x1_bf_ncl = x1.astype(jnp.bfloat16)
    out4 = jax.block_until_ready(
        residual_block_dilated_cl(jnp.transpose(x1_bf_ncl, (0, 2, 1)), p1, 2))
    assert out4.dtype == jnp.bfloat16
    ref4 = residual_block_ref(x1_bf_ncl.astype(jnp.float32), p1, 2)
    np.testing.assert_allclose(np.asarray(out4).astype(np.float32),
                               np.asarray(jnp.transpose(ref4, (0, 2, 1))),
                               rtol=1e-1, atol=1e-1)

    print("KERNEL_OK")
</pallas_src>

<mosaic_0001>
module attributes {stable_mosaic.version = 11 : i64} {
  func.func @kernel(%arg0: i32, %arg1: memref<1x16x4xf32, #tpu.memory_space<vmem>>, %arg2: memref<12x8xbf16, #tpu.memory_space<vmem>>, %arg3: memref<24x8xbf16, #tpu.memory_space<vmem>>, %arg4: memref<24x8xbf16, #tpu.memory_space<vmem>>, %arg5: memref<1x8xf32, #tpu.memory_space<vmem>>, %arg6: memref<1x8xf32, #tpu.memory_space<vmem>>, %arg7: memref<1x8xf32, #tpu.memory_space<vmem>>, %arg8: memref<4x8xbf16, #tpu.memory_space<vmem>>, %arg9: memref<1x8xf32, #tpu.memory_space<vmem>>, %arg10: memref<1x8x8xf32, #tpu.memory_space<vmem>>, %arg11: memref<18x4xf32, #tpu.memory_space<vmem>>, %arg12: memref<10x8xbf16, #tpu.memory_space<vmem>>, %arg13: memref<16x8xbf16, #tpu.memory_space<vmem>>) attributes {dimension_semantics = [#tpu.dimension_semantics<parallel>], iteration_bounds = array<i64: 2>, scalar_prefetch = 0 : i64, scratch_operands = 3 : i64, tpu.core_type = #tpu.core_type<tc>, window_params = [{transform_indices = @transform_0, window_bounds = array<i64: 1, 16, 4>}, {pipeline_mode = #tpu.pipeline_mode<synchronous>, transform_indices = @transform_1, window_bounds = array<i64: 12, 8>}, {pipeline_mode = #tpu.pipeline_mode<synchronous>, transform_indices = @transform_2, window_bounds = array<i64: 24, 8>}, {pipeline_mode = #tpu.pipeline_mode<synchronous>, transform_indices = @transform_3, window_bounds = array<i64: 24, 8>}, {pipeline_mode = #tpu.pipeline_mode<synchronous>, transform_indices = @transform_4, window_bounds = array<i64: 1, 8>}, {pipeline_mode = #tpu.pipeline_mode<synchronous>, transform_indices = @transform_5, window_bounds = array<i64: 1, 8>}, {pipeline_mode = #tpu.pipeline_mode<synchronous>, transform_indices = @transform_6, window_bounds = array<i64: 1, 8>}, {pipeline_mode = #tpu.pipeline_mode<synchronous>, transform_indices = @transform_7, window_bounds = array<i64: 4, 8>}, {pipeline_mode = #tpu.pipeline_mode<synchronous>, transform_indices = @transform_8, window_bounds = array<i64: 1, 8>}, {transform_indices = @transform_9, window_bounds = array<i64: 1, 8, 8>}]} {
    %c0 = arith.constant 0 : index
    %c0_0 = arith.constant 0 : index
    %c0_1 = arith.constant 0 : index
    %0 = vector.load %arg1[%c0, %c0_0, %c0_1] : memref<1x16x4xf32, #tpu.memory_space<vmem>>, vector<1x16x4xf32>
    %1 = vector.shape_cast %0 : vector<1x16x4xf32> to vector<16x4xf32>
    %cst = arith.constant 0.000000e+00 : f32
    %2 = vector.broadcast %cst : f32 to vector<1x4xf32>
    %c0_2 = arith.constant 0 : index
    %c0_3 = arith.constant 0 : index
    %3 = vector.load %arg11[%c0_2, %c0_3] : memref<18x4xf32, #tpu.memory_space<vmem>>, vector<1x4xf32>
    tpu.vector_store %arg11[%c0_2, %c0_3], %2 {strides = array<i32>} : memref<18x4xf32, #tpu.memory_space<vmem>>, vector<1x4xf32>,
    %cst_4 = arith.constant 0.000000e+00 : f32
    %4 = vector.broadcast %cst_4 : f32 to vector<1x4xf32>
    %c17 = arith.constant 17 : index
    %c0_5 = arith.constant 0 : index
    %5 = vector.load %arg11[%c17, %c0_5] : memref<18x4xf32, #tpu.memory_space<vmem>>, vector<1x4xf32>
    tpu.vector_store %arg11[%c17, %c0_5], %4 {strides = array<i32>} : memref<18x4xf32, #tpu.memory_space<vmem>>, vector<1x4xf32>,
    %c1 = arith.constant 1 : index
    %c0_6 = arith.constant 0 : index
    %6 = vector.load %arg11[%c1, %c0_6] : memref<18x4xf32, #tpu.memory_space<vmem>>, vector<16x4xf32>
    tpu.vector_store %arg11[%c1, %c0_6], %1 {strides = array<i32>} : memref<18x4xf32, #tpu.memory_space<vmem>>, vector<16x4xf32>,
    %c0_7 = arith.constant 0 : index
    %c0_8 = arith.constant 0 : index
    %7 = tpu.strided_load %arg11[%c0_7, %c0_8] {strides = array<i32: 2, 1>} : memref<18x4xf32, #tpu.memory_space<vmem>>, vector<8x4xf32>
    %c1_9 = arith.constant 1 : index
    %c0_10 = arith.constant 0 : index
    %8 = tpu.strided_load %arg11[%c1_9, %c0_10] {strides = array<i32: 2, 1>} : memref<18x4xf32, #tpu.memory_space<vmem>>, vector<8x4xf32>
    %c2 = arith.constant 2 : index
    %c0_11 = arith.constant 0 : index
    %9 = tpu.strided_load %arg11[%c2, %c0_11] {strides = array<i32: 2, 1>} : memref<18x4xf32, #tpu.memory_space<vmem>>, vector<8x4xf32>
    %10 = tpu.concatenate %7, %8, %9 in 1 : vector<8x4xf32>, vector<8x4xf32>, vector<8x4xf32> -> vector<8x12xf32>
    %11 = arith.truncf %10 : vector<8x12xf32> to vector<8x12xbf16>
    %c0_12 = arith.constant 0 : index
    %c0_13 = arith.constant 0 : index
    %12 = vector.load %arg2[%c0_12, %c0_13] : memref<12x8xbf16, #tpu.memory_space<vmem>>, vector<12x8xbf16>
    %cst_14 = arith.constant dense<0.000000e+00> : vector<8x8xf32>
    %13 = tpu.matmul %11, %12, %cst_14 {dimension_numbers = #tpu.dot_dimension_numbers<[1], [0], [0], [1], [0, 0, 1, 1], [], []>} : vector<8x12xbf16>, vector<12x8xbf16>, vector<8x8xf32> -> vector<8x8xf32>
    %c0_15 = arith.constant 0 : index
    %c0_16 = arith.constant 0 : index
    %14 = vector.load %arg5[%c0_15, %c0_16] : memref<1x8xf32, #tpu.memory_space<vmem>>, vector<1x8xf32>
    %15 = vector.broadcast %14 : vector<1x8xf32> to vector<8x8xf32>
    %16 = arith.addf %13, %15 : vector<8x8xf32>
    %cst_17 = arith.constant 0.000000e+00 : f32
    %17 = vector.broadcast %cst_17 : f32 to vector<8x8xf32>
    %18 = arith.maximumf %16, %17 : vector<8x8xf32>
    %cst_18 = arith.constant 0.000000e+00 : bf16
    %19 = vector.broadcast %cst_18 : bf16 to vector<1x8xbf16>
    %c0_19 = arith.constant 0 : index
    %c0_20 = arith.constant 0 : index
    %20 = vector.load %arg12[%c0_19, %c0_20] : memref<10x8xbf16, #tpu.memory_space<vmem>>, vector<1x8xbf16>
    tpu.vector_store %arg12[%c0_19, %c0_20], %19 {strides = array<i32>} : memref<10x8xbf16, #tpu.memory_space<vmem>>, vector<1x8xbf16>,
    %cst_21 = arith.constant 0.000000e+00 : bf16
    %21 = vector.broadcast %cst_21 : bf16 to vector<1x8xbf16>
    %c9 = arith.constant 9 : index
    %c0_22 = arith.constant 0 : index
    %22 = vector.load %arg12[%c9, %c0_22] : memref<10x8xbf16, #tpu.memory_space<vmem>>, vector<1x8xbf16>
    tpu.vector_store %arg12[%c9, %c0_22], %21 {strides = array<i32>} : memref<10x8xbf16, #tpu.memory_space<vmem>>, vector<1x8xbf16>,
    %23 = arith.truncf %18 : vector<8x8xf32> to vector<8x8xbf16>
    %c1_23 = arith.constant 1 : index
    %c0_24 = arith.constant 0 : index
    %24 = vector.load %arg12[%c1_23, %c0_24] : memref<10x8xbf16, #tpu.memory_space<vmem>>, vector<8x8xbf16>
    tpu.vector_store %arg12[%c1_23, %c0_24], %23 {strides = array<i32>} : memref<10x8xbf16, #tpu.memory_space<vmem>>, vector<8x8xbf16>,
    %c0_25 = arith.constant 0 : index
    %c0_26 = arith.constant 0 : index
    %25 = vector.load %arg12[%c0_25, %c0_26] : memref<10x8xbf16, #tpu.memory_space<vmem>>, vector<8x8xbf16>
    %c1_27 = arith.constant 1 : index
    %c0_28 = arith.constant 0 : index
    %26 = vector.load %arg12[%c1_27, %c0_28] : memref<10x8xbf16, #tpu.memory_space<vmem>>, vector<8x8xbf16>
    %c2_29 = arith.constant 2 : index
    %c0_30 = arith.constant 0 : index
    %27 = vector.load %arg12[%c2_29, %c0_30] : memref<10x8xbf16, #tpu.memory_space<vmem>>, vector<8x8xbf16>
    %28 = tpu.concatenate %25, %26, %27 in 1 : vector<8x8xbf16>, vector<8x8xbf16>, vector<8x8xbf16> -> vector<8x24xbf16>
    %c0_31 = arith.constant 0 : index
    %c0_32 = arith.constant 0 : index
    %29 = vector.load %arg3[%c0_31, %c0_32] : memref<24x8xbf16, #tpu.memory_space<vmem>>, vector<24x8xbf16>
    %cst_33 = arith.constant dense<0.000000e+00> : vector<8x8xf32>
    %30 = tpu.matmul %28, %29, %cst_33 {dimension_numbers = #tpu.dot_dimension_numbers<[1], [0], [0], [1], [0, 0, 1, 1], [], []>} : vector<8x24xbf16>, vector<24x8xbf16>, vector<8x8xf32> -> vector<8x8xf32>
    %c0_34 = arith.constant 0 : index
    %c0_35 = arith.constant 0 : index
    %31 = vector.load %arg6[%c0_34, %c0_35] : memref<1x8xf32, #tpu.memory_space<vmem>>, vector<1x8xf32>
    %32 = vector.broadcast %31 : vector<1x8xf32> to vector<8x8xf32>
    %33 = arith.addf %30, %32 : vector<8x8xf32>
    %cst_36 = arith.constant 0.000000e+00 : f32
    %34 = vector.broadcast %cst_36 : f32 to vector<8x8xf32>
    %35 = arith.maximumf %33, %34 : vector<8x8xf32>
    %cst_37 = arith.constant 0.000000e+00 : bf16
    %36 = vector.broadcast %cst_37 : bf16 to vector<4x8xbf16>
    %c0_38 = arith.constant 0 : index
    %c0_39 = arith.constant 0 : index
    %37 = vector.load %arg13[%c0_38, %c0_39] : memref<16x8xbf16, #tpu.memory_space<vmem>>, vector<4x8xbf16>
    tpu.vector_store %arg13[%c0_38, %c0_39], %36 {strides = array<i32>} : memref<16x8xbf16, #tpu.memory_space<vmem>>, vector<4x8xbf16>,
    %cst_40 = arith.constant 0.000000e+00 : bf16
    %38 = vector.broadcast %cst_40 : bf16 to vector<4x8xbf16>
    %c12 = arith.constant 12 : index
    %c0_41 = arith.constant 0 : index
    %39 = vector.load %arg13[%c12, %c0_41] : memref<16x8xbf16, #tpu.memory_space<vmem>>, vector<4x8xbf16>
    tpu.vector_store %arg13[%c12, %c0_41], %38 {strides = array<i32>} : memref<16x8xbf16, #tpu.memory_space<vmem>>, vector<4x8xbf16>,
    %40 = arith.truncf %35 : vector<8x8xf32> to vector<8x8xbf16>
    %c4 = arith.constant 4 : index
    %c0_42 = arith.constant 0 : index
    %41 = vector.load %arg13[%c4, %c0_42] : memref<16x8xbf16, #tpu.memory_space<vmem>>, vector<8x8xbf16>
    tpu.vector_store %arg13[%c4, %c0_42], %40 {strides = array<i32>} : memref<16x8xbf16, #tpu.memory_space<vmem>>, vector<8x8xbf16>,
    %c0_43 = arith.constant 0 : index
    %c0_44 = arith.constant 0 : index
    %42 = vector.load %arg13[%c0_43, %c0_44] : memref<16x8xbf16, #tpu.memory_space<vmem>>, vector<8x8xbf16>
    %c4_45 = arith.constant 4 : index
    %c0_46 = arith.constant 0 : index
    %43 = vector.load %arg13[%c4_45, %c0_46] : memref<16x8xbf16, #tpu.memory_space<vmem>>, vector<8x8xbf16>
    %c8 = arith.constant 8 : index
    %c0_47 = arith.constant 0 : index
    %44 = vector.load %arg13[%c8, %c0_47] : memref<16x8xbf16, #tpu.memory_space<vmem>>, vector<8x8xbf16>
    %45 = tpu.concatenate %42, %43, %44 in 1 : vector<8x8xbf16>, vector<8x8xbf16>, vector<8x8xbf16> -> vector<8x24xbf16>
    %c0_48 = arith.constant 0 : index
    %c0_49 = arith.constant 0 : index
    %46 = vector.load %arg4[%c0_48, %c0_49] : memref<24x8xbf16, #tpu.memory_space<vmem>>, vector<24x8xbf16>
    %cst_50 = arith.constant dense<0.000000e+00> : vector<8x8xf32>
    %47 = tpu.matmul %45, %46, %cst_50 {dimension_numbers = #tpu.dot_dimension_numbers<[1], [0], [0], [1], [0, 0, 1, 1], [], []>} : vector<8x24xbf16>, vector<24x8xbf16>, vector<8x8xf32> -> vector<8x8xf32>
    %c0_51 = arith.constant 0 : index
    %c0_52 = arith.constant 0 : index
    %48 = vector.load %arg7[%c0_51, %c0_52] : memref<1x8xf32, #tpu.memory_space<vmem>>, vector<1x8xf32>
    %49 = vector.broadcast %48 : vector<1x8xf32> to vector<8x8xf32>
    %50 = arith.addf %47, %49 : vector<8x8xf32>
    %c1_53 = arith.constant 1 : index
    %c0_54 = arith.constant 0 : index
    %51 = tpu.strided_load %arg11[%c1_53, %c0_54] {strides = array<i32: 2, 1>} : memref<18x4xf32, #tpu.memory_space<vmem>>, vector<8x4xf32>
    %52 = arith.truncf %51 : vector<8x4xf32> to vector<8x4xbf16>
    %c0_55 = arith.constant 0 : index
    %c0_56 = arith.constant 0 : index
    %53 = vector.load %arg8[%c0_55, %c0_56] : memref<4x8xbf16, #tpu.memory_space<vmem>>, vector<4x8xbf16>
    %cst_57 = arith.constant dense<0.000000e+00> : vector<8x8xf32>
    %54 = tpu.matmul %52, %53, %cst_57 {dimension_numbers = #tpu.dot_dimension_numbers<[1], [0], [0], [1], [0, 0, 1, 1], [], []>} : vector<8x4xbf16>, vector<4x8xbf16>, vector<8x8xf32> -> vector<8x8xf32>
    %c0_58 = arith.constant 0 : index
    %c0_59 = arith.constant 0 : index
    %55 = vector.load %arg9[%c0_58, %c0_59] : memref<1x8xf32, #tpu.memory_space<vmem>>, vector<1x8xf32>
    %56 = vector.broadcast %55 : vector<1x8xf32> to vector<8x8xf32>
    %57 = arith.addf %54, %56 : vector<8x8xf32>
    %58 = arith.addf %50, %57 : vector<8x8xf32>
    %cst_60 = arith.constant 0.000000e+00 : f32
    %59 = vector.broadcast %cst_60 : f32 to vector<8x8xf32>
    %60 = arith.maximumf %58, %59 : vector<8x8xf32>
    %c0_61 = arith.constant 0 : index
    %c0_62 = arith.constant 0 : index
    %c0_63 = arith.constant 0 : index
    %61 = vector.load %arg10[%c0_61, %c0_62, %c0_63] : memref<1x8x8xf32, #tpu.memory_space<vmem>>, vector<1x8x8xf32>
    %62 = vector.shape_cast %61 : vector<1x8x8xf32> to vector<8x8xf32>
    %63 = vector.shape_cast %60 : vector<8x8xf32> to vector<1x8x8xf32>
    tpu.vector_store %arg10[%c0_61, %c0_62, %c0_63], %63 {strides = array<i32>} : memref<1x8x8xf32, #tpu.memory_space<vmem>>, vector<1x8x8xf32>,
    return
  }
  func.func @transform_0(%arg0: i32) -> (i32, i32, i32) {
    %c0_i32 = arith.constant 0 : i32
    %c0_i32_0 = arith.constant 0 : i32
    %c0_i32_1 = arith.constant 0 : i32
    return %arg0, %c0_i32, %c0_i32_0 : i32, i32, i32
  }
  func.func @transform_1(%arg0: i32) -> (i32, i32) {
    %c0_i32 = arith.constant 0 : i32
    %c0_i32_0 = arith.constant 0 : i32
    %c0_i32_1 = arith.constant 0 : i32
    return %c0_i32, %c0_i32_0 : i32, i32
  }
  func.func @transform_2(%arg0: i32) -> (i32, i32) {
    %c0_i32 = arith.constant 0 : i32
    %c0_i32_0 = arith.constant 0 : i32
    %c0_i32_1 = arith.constant 0 : i32
    return %c0_i32, %c0_i32_0 : i32, i32
  }
  func.func @transform_3(%arg0: i32) -> (i32, i32) {
    %c0_i32 = arith.constant 0 : i32
    %c0_i32_0 = arith.constant 0 : i32
    %c0_i32_1 = arith.constant 0 : i32
    return %c0_i32, %c0_i32_0 : i32, i32
  }
  func.func @transform_4(%arg0: i32) -> (i32, i32) {
    %c0_i32 = arith.constant 0 : i32
    %c0_i32_0 = arith.constant 0 : i32
    %c0_i32_1 = arith.constant 0 : i32
    return %c0_i32, %c0_i32_0 : i32, i32
  }
  func.func @transform_5(%arg0: i32) -> (i32, i32) {
    %c0_i32 = arith.constant 0 : i32
    %c0_i32_0 = arith.constant 0 : i32
    %c0_i32_1 = arith.constant 0 : i32
    return %c0_i32, %c0_i32_0 : i32, i32
  }
  func.func @transform_6(%arg0: i32) -> (i32, i32) {
    %c0_i32 = arith.constant 0 : i32
    %c0_i32_0 = arith.constant 0 : i32
    %c0_i32_1 = arith.constant 0 : i32
    return %c0_i32, %c0_i32_0 : i32, i32
  }
  func.func @transform_7(%arg0: i32) -> (i32, i32) {
    %c0_i32 = arith.constant 0 : i32
    %c0_i32_0 = arith.constant 0 : i32
    %c0_i32_1 = arith.constant 0 : i32
    return %c0_i32, %c0_i32_0 : i32, i32
  }
  func.func @transform_8(%arg0: i32) -> (i32, i32) {
    %c0_i32 = arith.constant 0 : i32
    %c0_i32_0 = arith.constant 0 : i32
    %c0_i32_1 = arith.constant 0 : i32
    return %c0_i32, %c0_i32_0 : i32, i32
  }
  func.func @transform_9(%arg0: i32) -> (i32, i32, i32) {
    %c0_i32 = arith.constant 0 : i32
    %c0_i32_0 = arith.constant 0 : i32
    %c0_i32_1 = arith.constant 0 : i32
    return %arg0, %c0_i32, %c0_i32_0 : i32, i32, i32
  }
}

</mosaic_0001>

<llo_original>
// kernel: residual_block_dilated.1
$region0: #{residual_block_dilated.1}
  #allocation0 [shape = 'u32[]', space=smem, size = 0x4, offset = 0x4, fixed_abs, tag = 'smem constant byte address 0x4 - core index']
  #allocation1 [shape = 'u32[72,128]{1,0:T(1,128)}', space=vmem, size = 0x9000, scoped, tag = 'internal scratch']
  #allocation2 [shape = 'f32[18,4]{1,0:T(8,128)}', space=vmem, size = 0x3000, scoped, tag = 'scratch operand']
  #allocation3 [shape = 'bf16[10,8]{1,0:T(8,128)(2,1)}', space=vmem, size = 0x1000, scoped, tag = 'scratch operand']
  #allocation4 [shape = 'bf16[16,8]{1,0:T(8,128)(2,1)}', space=vmem, size = 0x1000, scoped, tag = 'scratch operand']
  %s0 = inlined_call_operand.vmem [shape: f32[2,16,4], index: 0, kind: input, shape index: {}]
  %s1 = inlined_call_operand.vmem [shape: bf16[12,8], index: 1, kind: input, shape index: {}]
  %s2 = inlined_call_operand.vmem [shape: bf16[24,8], index: 2, kind: input, shape index: {}]
  %s3 = inlined_call_operand.vmem [shape: bf16[24,8], index: 3, kind: input, shape index: {}]
  %s4 = inlined_call_operand.vmem [shape: f32[1,8], index: 4, kind: input, shape index: {}]
  %s5 = inlined_call_operand.vmem [shape: f32[1,8], index: 5, kind: input, shape index: {}]
  %s6 = inlined_call_operand.vmem [shape: f32[1,8], index: 6, kind: input, shape index: {}]
  %s7 = inlined_call_operand.vmem [shape: bf16[4,8], index: 7, kind: input, shape index: {}]
  %s8 = inlined_call_operand.vmem [shape: f32[1,8], index: 8, kind: input, shape index: {}]
  %s9 = inlined_call_operand.vmem [shape: f32[2,8,8], index: 9, kind: output, shape index: {}]
  %s10 = sld [smem:[#allocation0]]
  $region69: #{residual_block_dilated.1} parent=0
    _
  %s12 = ssub.s32 1, %s10
  %s13 = scalar_select 0, %s12, %s10
  loop: start=0, step=1, limit=4
  $region2: #{residual_block_dilated.1} parent=0 // loop_pre_header
    _
  $region3: #{residual_block_dilated.1} parent=0 // loop_header
    %s15 = sphi 0, %s19
    %p16 = scmp.ge.s32.totalorder %s15, 4
    %s25 = sphi 0, %s27
    %s28 = sphi 0, %s25
    %s29 = sphi 0, %s28
    %s45 = sphi 0, %s29
    %s49 = sphi 0, %s49
    %s51 = sphi 0, %s49
    %s52 = sphi 0, %s51
    %s66 = sphi 0, %s52
    %s70 = sphi 0, %s70
    %s72 = sphi 0, %s70
    %s73 = sphi 0, %s72
    %s87 = sphi 0, %s73
    %s91 = sphi 0, %s91
    %s93 = sphi 0, %s91
    %s94 = sphi 0, %s93
    %s108 = sphi 0, %s94
    %s112 = sphi 0, %s112
    %s114 = sphi 0, %s112
    %s115 = sphi 0, %s114
    %s129 = sphi 0, %s115
    %s133 = sphi 0, %s133
    %s135 = sphi 0, %s133
    %s136 = sphi 0, %s135
    %s150 = sphi 0, %s136
    %s154 = sphi 0, %s154
    %s156 = sphi 0, %s154
    %s157 = sphi 0, %s156
    %s171 = sphi 0, %s157
    %s175 = sphi 0, %s175
    %s177 = sphi 0, %s175
    %s178 = sphi 0, %s177
    %s192 = sphi 0, %s178
    %s196 = sphi 0, %s196
    %s198 = sphi 0, %s196
    %s199 = sphi 0, %s198
    %s213 = sphi 0, %s199
    %s219 = sphi 0, %s221
    %s222 = sphi 0, %s219
    %s223 = sphi 0, %s222
    %s239 = sphi 0, %s223
  $region4: #{residual_block_dilated.1} parent=0 // loop_header_branch
    %18 = sbr.rel (%p16) target = $region8
  $region5: #{residual_block_dilated.1} parent=0 // loop_body
    %s20 = ssub.s32 %s15, 1
    %s21 = ssub.s32 %s15, 2
    %s22 = sadd.s32 %s15, 1
    %s23 = ssub.s32 %s15, %s22
    %p24 = scmp.eq.s32.totalorder %s23, 0
    %s26 = sadd.s32 %s25, 1
    %s27 = scalar_select %p24, %s25, %s26
    %p30 = pneg %p24
    %p31 = scmp.eq.s32.totalorder %s15, 1
    %p32 = por %p30, %p31
    %p33 = scmp.ne.s32.totalorder %s25, %s28
    %p34 = scmp.eq.s32.totalorder %s15, 0
    %p35 = por %p33, %p34
    %p36 = scmp.ne.s32.totalorder %s25, %s28
    %p37 = scmp.eq.s32.totalorder %s20, 1
    %p38 = por %p36, %p37
    %p39 = scmp.ne.s32.totalorder %s28, %s29
    %p40 = scmp.eq.s32.totalorder %s20, 0
    %p41 = por %p39, %p40
    %p42 = scmp.ne.s32.totalorder %s28, %s29
    %p43 = scmp.eq.s32.totalorder %s21, 1
    %p44 = por %p42, %p43
    %p46 = scmp.ne.s32.totalorder %s29, %s45
    %p47 = scmp.eq.s32.totalorder %s21, 0
    %p48 = por %p46, %p47
    %s50 = sadd.s32 %s49, 1
    %p53 = scmp.eq.s32.totalorder %s15, 1
    %p54 = scmp.ne.s32.totalorder %s49, %s51
    %p55 = scmp.eq.s32.totalorder %s15, 0
    %p56 = por %p54, %p55
    %p57 = scmp.ne.s32.totalorder %s49, %s51
    %p58 = scmp.eq.s32.totalorder %s20, 1
    %p59 = por %p57, %p58
    %p60 = scmp.ne.s32.totalorder %s51, %s52
    %p61 = scmp.eq.s32.totalorder %s20, 0
    %p62 = por %p60, %p61
    %p63 = scmp.ne.s32.totalorder %s51, %s52
    %p64 = scmp.eq.s32.totalorder %s21, 1
    %p65 = por %p63, %p64
    %p67 = scmp.ne.s32.totalorder %s52, %s66
    %p68 = scmp.eq.s32.totalorder %s21, 0
    %p69 = por %p67, %p68
    %s71 = sadd.s32 %s70, 1
    %p74 = scmp.eq.s32.totalorder %s15, 1
    %p75 = scmp.ne.s32.totalorder %s70, %s72
    %p76 = scmp.eq.s32.totalorder %s15, 0
    %p77 = por %p75, %p76
    %p78 = scmp.ne.s32.totalorder %s70, %s72
    %p79 = scmp.eq.s32.totalorder %s20, 1
    %p80 = por %p78, %p79
    %p81 = scmp.ne.s32.totalorder %s72, %s73
    %p82 = scmp.eq.s32.totalorder %s20, 0
    %p83 = por %p81, %p82
    %p84 = scmp.ne.s32.totalorder %s72, %s73
    %p85 = scmp.eq.s32.totalorder %s21, 1
    %p86 = por %p84, %p85
    %p88 = scmp.ne.s32.totalorder %s73, %s87
    %p89 = scmp.eq.s32.totalorder %s21, 0
    %p90 = por %p88, %p89
    %s92 = sadd.s32 %s91, 1
    %p95 = scmp.eq.s32.totalorder %s15, 1
    %p96 = scmp.ne.s32.totalorder %s91, %s93
    %p97 = scmp.eq.s32.totalorder %s15, 0
    %p98 = por %p96, %p97
    %p99 = scmp.ne.s32.totalorder %s91, %s93
    %p100 = scmp.eq.s32.totalorder %s20, 1
    %p101 = por %p99, %p100
    %p102 = scmp.ne.s32.totalorder %s93, %s94
    %p103 = scmp.eq.s32.totalorder %s20, 0
    %p104 = por %p102, %p103
    %p105 = scmp.ne.s32.totalorder %s93, %s94
    %p106 = scmp.eq.s32.totalorder %s21, 1
    %p107 = por %p105, %p106
    %p109 = scmp.ne.s32.totalorder %s94, %s108
    %p110 = scmp.eq.s32.totalorder %s21, 0
    %p111 = por %p109, %p110
    %s113 = sadd.s32 %s112, 1
    %p116 = scmp.eq.s32.totalorder %s15, 1
    %p117 = scmp.ne.s32.totalorder %s112, %s114
    %p118 = scmp.eq.s32.totalorder %s15, 0
    %p119 = por %p117, %p118
    %p120 = scmp.ne.s32.totalorder %s112, %s114
    %p121 = scmp.eq.s32.totalorder %s20, 1
    %p122 = por %p120, %p121
    %p123 = scmp.ne.s32.totalorder %s114, %s115
    %p124 = scmp.eq.s32.totalorder %s20, 0
    %p125 = por %p123, %p124
    %p126 = scmp.ne.s32.totalorder %s114, %s115
    %p127 = scmp.eq.s32.totalorder %s21, 1
    %p128 = por %p126, %p127
    %p130 = scmp.ne.s32.totalorder %s115, %s129
    %p131 = scmp.eq.s32.totalorder %s21, 0
    %p132 = por %p130, %p131
    %s134 = sadd.s32 %s133, 1
    %p137 = scmp.eq.s32.totalorder %s15, 1
    %p138 = scmp.ne.s32.totalorder %s133, %s135
    %p139 = scmp.eq.s32.totalorder %s15, 0
    %p140 = por %p138, %p139
    %p141 = scmp.ne.s32.totalorder %s133, %s135
    %p142 = scmp.eq.s32.totalorder %s20, 1
    %p143 = por %p141, %p142
    %p144 = scmp.ne.s32.totalorder %s135, %s136
    %p145 = scmp.eq.s32.totalorder %s20, 0
    %p146 = por %p144, %p145
    %p147 = scmp.ne.s32.totalorder %s135, %s136
    %p148 = scmp.eq.s32.totalorder %s21, 1
    %p149 = por %p147, %p148
    %p151 = scmp.ne.s32.totalorder %s136, %s150
    %p152 = scmp.eq.s32.totalorder %s21, 0
    %p153 = por %p151, %p152
    %s155 = sadd.s32 %s154, 1
    %p158 = scmp.eq.s32.totalorder %s15, 1
    %p159 = scmp.ne.s32.totalorder %s154, %s156
    %p160 = scmp.eq.s32.totalorder %s15, 0
    %p161 = por %p159, %p160
    %p162 = scmp.ne.s32.totalorder %s154, %s156
    %p163 = scmp.eq.s32.totalorder %s20, 1
    %p164 = por %p162, %p163
    %p165 = scmp.ne.s32.totalorder %s156, %s157
    %p166 = scmp.eq.s32.totalorder %s20, 0
    %p167 = por %p165, %p166
    %p168 = scmp.ne.s32.totalorder %s156, %s157
    %p169 = scmp.eq.s32.totalorder %s21, 1
    %p170 = por %p168, %p169
    %p172 = scmp.ne.s32.totalorder %s157, %s171
    %p173 = scmp.eq.s32.totalorder %s21, 0
    %p174 = por %p172, %p173
    %s176 = sadd.s32 %s175, 1
    %p179 = scmp.eq.s32.totalorder %s15, 1
    %p180 = scmp.ne.s32.totalorder %s175, %s177
    %p181 = scmp.eq.s32.totalorder %s15, 0
    %p182 = por %p180, %p181
    %p183 = scmp.ne.s32.totalorder %s175, %s177
    %p184 = scmp.eq.s32.totalorder %s20, 1
    %p185 = por %p183, %p184
    %p186 = scmp.ne.s32.totalorder %s177, %s178
    %p187 = scmp.eq.s32.totalorder %s20, 0
    %p188 = por %p186, %p187
    %p189 = scmp.ne.s32.totalorder %s177, %s178
    %p190 = scmp.eq.s32.totalorder %s21, 1
    %p191 = por %p189, %p190
    %p193 = scmp.ne.s32.totalorder %s178, %s192
    %p194 = scmp.eq.s32.totalorder %s21, 0
    %p195 = por %p193, %p194
    %s197 = sadd.s32 %s196, 1
    %p200 = scmp.eq.s32.totalorder %s15, 1
    %p201 = scmp.ne.s32.totalorder %s196, %s198
    %p202 = scmp.eq.s32.totalorder %s15, 0
    %p203 = por %p201, %p202
    %p204 = scmp.ne.s32.totalorder %s196, %s198
    %p205 = scmp.eq.s32.totalorder %s20, 1
    %p206 = por %p204, %p205
    %p207 = scmp.ne.s32.totalorder %s198, %s199
    %p208 = scmp.eq.s32.totalorder %s20, 0
    %p209 = por %p207, %p208
    %p210 = scmp.ne.s32.totalorder %s198, %s199
    %p211 = scmp.eq.s32.totalorder %s21, 1
    %p212 = por %p210, %p211
    %p214 = scmp.ne.s32.totalorder %s199, %s213
    %p215 = scmp.eq.s32.totalorder %s21, 0
    %p216 = por %p214, %p215
    %s217 = ssub.s32 %s15, %s22
    %p218 = scmp.eq.s32.totalorder %s217, 0
    %s220 = sadd.s32 %s219, 1
    %s221 = scalar_select %p218, %s219, %s220
    %p224 = pneg %p218
    %p225 = scmp.eq.s32.totalorder %s15, 1
    %p226 = por %p224, %p225
    %p227 = scmp.ne.s32.totalorder %s219, %s222
    %p228 = scmp.eq.s32.totalorder %s15, 0
    %p229 = por %p227, %p228
    %p230 = scmp.ne.s32.totalorder %s219, %s222
    %p231 = scmp.eq.s32.totalorder %s20, 1
    %p232 = por %p230, %p231
    %p233 = scmp.ne.s32.totalorder %s222, %s223
    %p234 = scmp.eq.s32.totalorder %s20, 0
    %p235 = por %p233, %p234
    %p236 = scmp.ne.s32.totalorder %s222, %s223
    %p237 = scmp.eq.s32.totalorder %s21, 1
    %p238 = por %p236, %p237
    %p240 = scmp.ne.s32.totalorder %s223, %s239
    %p241 = scmp.eq.s32.totalorder %s21, 0
    %p242 = por %p240, %p241
    %p243 = scmp.le.s32.totalorder 1, %s15
    %p244 = scmp.lt.s32.totalorder %s15, 3
    %p245 = pnand %p243, %p244
    %p246 = pneg %p245
    // Predicated region
    $region9: #{residual_block_dilated.1} parent=5 // pred_check
      _
    $region10: #{residual_block_dilated.1} parent=5 // pred_check_branch
      %248 = sbr.rel (%p245) target = $region12
    $region11: #{residual_block_dilated.1} parent=5 // pred_region
      %s249 = ssub.s32 %s15, 1
      // Predicated region
      $region13: #{residual_block_dilated.1} parent=11 // pred_check
        %p250 = pneg %p62
      $region14: #{residual_block_dilated.1} parent=11 // pred_check_branch
        %252 = sbr.rel (%p250) target = $region16
      $region15: #{residual_block_dilated.1} parent=11 // pred_region
        _
      $region16: #{residual_block_dilated.1} parent=11 // pred_fallthru
        _
      // Predicated region
      $region17: #{residual_block_dilated.1} parent=11 // pred_check
        %p253 = pneg %p83
      $region18: #{residual_block_dilated.1} parent=11 // pred_check_branch
        %255 = sbr.rel (%p253) target = $region20
      $region19: #{residual_block_dilated.1} parent=11 // pred_region
        _
      $region20: #{residual_block_dilated.1} parent=11 // pred_fallthru
        _
      // Predicated region
      $region21: #{residual_block_dilated.1} parent=11 // pred_check
        %p256 = pneg %p104
      $region22: #{residual_block_dilated.1} parent=11 // pred_check_branch
        %258 = sbr.rel (%p256) target = $region24
      $region23: #{residual_block_dilated.1} parent=11 // pred_region
        _
      $region24: #{residual_block_dilated.1} parent=11 // pred_fallthru
        _
      // Predicated region
      $region25: #{residual_block_dilated.1} parent=11 // pred_check
        %p259 = pneg %p125
      $region26: #{residual_block_dilated.1} parent=11 // pred_check_branch
        %261 = sbr.rel (%p259) target = $region28
      $region27: #{residual_block_dilated.1} parent=11 // pred_region
        _
      $region28: #{residual_block_dilated.1} parent=11 // pred_fallthru
        _
      // Predicated region
      $region29: #{residual_block_dilated.1} parent=11 // pred_check
        %p262 = pneg %p146
      $region30: #{residual_block_dilated.1} parent=11 // pred_check_branch
        %264 = sbr.rel (%p262) target = $region32
      $region31: #{residual_block_dilated.1} parent=11 // pred_region
        _
      $region32: #{residual_block_dilated.1} parent=11 // pred_fallthru
        _
      // Predicated region
      $region33: #{residual_block_dilated.1} parent=11 // pred_check
        %p265 = pneg %p167
      $region34: #{residual_block_dilated.1} parent=11 // pred_check_branch
        %267 = sbr.rel (%p265) target = $region36
      $region35: #{residual_block_dilated.1} parent=11 // pred_region
        _
      $region36: #{residual_block_dilated.1} parent=11 // pred_fallthru
        _
      // Predicated region
      $region37: #{residual_block_dilated.1} parent=11 // pred_check
        %p268 = pneg %p188
      $region38: #{residual_block_dilated.1} parent=11 // pred_check_branch
        %270 = sbr.rel (%p268) target = $region40
      $region39: #{residual_block_dilated.1} parent=11 // pred_region
        _
      $region40: #{residual_block_dilated.1} parent=11 // pred_fallthru
        _
      // Predicated region
      $region41: #{residual_block_dilated.1} parent=11 // pred_check
        %p271 = pneg %p209
      $region42: #{residual_block_dilated.1} parent=11 // pred_check_branch
        %273 = sbr.rel (%p271) target = $region44
      $region43: #{residual_block_dilated.1} parent=11 // pred_region
        _
      $region44: #{residual_block_dilated.1} parent=11 // pred_fallthru
        _
    $region12: #{residual_block_dilated.1} parent=5 // pred_fallthru
      _
    %p274 = scmp.lt.s32.totalorder %s15, 2
    // Predicated region
    $region45: #{residual_block_dilated.1} parent=5 // pred_check
      %p275 = pneg %p274
    $region46: #{residual_block_dilated.1} parent=5 // pred_check_branch
      %277 = sbr.rel (%p275) target = $region48
    $region47: #{residual_block_dilated.1} parent=5 // pred_region
      // Predicated region
      $region49: #{residual_block_dilated.1} parent=47 // pred_check
        %p278 = pneg %p35
      $region50: #{residual_block_dilated.1} parent=47 // pred_check_branch
        %280 = sbr.rel (%p278) target = $region52
      $region51: #{residual_block_dilated.1} parent=47 // pred_region
        %p281 = scmp.lt.s32.totalorder %s15, 1
        %s282 = scalar_select %p281, %s15, 1
        %s283 = smul.addr %s282, 2
        %s284 = smul.addr %s283, 8
        %s285 = scalar_lea.vmem %s0, %s284
      $region52: #{residual_block_dilated.1} parent=47 // pred_fallthru
        _
    $region48: #{residual_block_dilated.1} parent=5 // pred_fallthru
      _
    %p286 = scmp.le.s32.totalorder 1, %s15
    %p287 = scmp.lt.s32.totalorder %s15, 3
    %p288 = pnand %p286, %p287
    %p289 = pneg %p288
    // Predicated region
    $region53: #{residual_block_dilated.1} parent=5 // pred_check
      _
    $region54: #{residual_block_dilated.1} parent=5 // pred_check_branch
      %291 = sbr.rel (%p288) target = $region56
    $region55: #{residual_block_dilated.1} parent=5 // pred_region
      %s292 = ssub.s32 %s15, 1
      %p293 = scmp.lt.s32.totalorder %s20, 1
      %s294 = scalar_select %p293, %s20, 1
      %s295 = smul.addr %s294, 2
      %s296 = smul.addr %s295, 8
      %s297 = scalar_lea.vmem %s0, %s296
      %p298 = pneg %p41
      %p299 = pneg %p38
      %p300 = pneg %p62
      %p301 = pneg %p59
      %p302 = pneg %p83
      %p303 = pneg %p80
      %p304 = pneg %p104
      %p305 = pneg %p101
      %p306 = pneg %p125
      %p307 = pneg %p122
      %p308 = pneg %p146
      %p309 = pneg %p143
      %p310 = pneg %p167
      %p311 = pneg %p164
      %p312 = pneg %p188
      %p313 = pneg %p185
      %p314 = pneg %p209
      %p315 = pneg %p206
      %p316 = pneg %p235
      %p317 = pneg %p232
      %p318 = scmp.lt.s32.totalorder %s20, 1
      %s319 = scalar_select %p318, %s20, 1
      %s320 = smul.addr %s319, 8
      %s321 = scalar_lea.vmem %s9, %s320
      %p322 = scmp.lt.s32.totalorder %s20, 1
      %s323 = scalar_select %p322, %s20, 1
      %s324 = smul.addr %s323, 2
      %s325 = smul.addr %s324, 8
      %s326 = scalar_lea.vmem %s0, %s325
      %p327 = scmp.lt.s32.totalorder %s20, 1
      %s328 = scalar_select %p327, %s20, 1
      %s329 = smul.addr %s328, 8
      %s330 = scalar_lea.vmem %s9, %s329
      %v332 = vld [vmem:[%s326] sm:$0xff]
      %v333 = vld [vmem:[%s326 + $0x8] sm:$0xff]
      %vm334 = vcmask 24576
      %335 = vst.msk [vmem:[#allocation2] sm:$0x1] %vm334, 0.0
      %336 = vst.msk [vmem:[#allocation2 + $0x11] sm:$0x1] %vm334, 0.0
      %vm337 = vcmask 31744
      %338 = vst.msk [vmem:[#allocation2 + $0x1] sm:$0xff] %vm337, %v332
      %339 = vst.msk [vmem:[#allocation2 + $0x9] sm:$0xff] %vm337, %v333
      %v340 = vld [vmem:[#allocation2] ss:$2 sm:$0xff]
      %s341 = scalar_lea.vmem [#allocation2], 1
      %v342 = vld [vmem:[%s341] ss:$2 sm:$0xff]
      %s343 = scalar_lea.vmem [#allocation2], 2
      %v344 = vld [vmem:[%s343] ss:$2 sm:$0xff]
      %346 = vrot.lane.b32.xlu0 %v342, 4
      %v347 = vpop.permute.xlu0 %346
      %350 = vrot.lane.b32.xlu0 %v344, 8
      %v351 = vpop.permute.xlu0 %350
      %v353 = vsel %vm337, %v340, %v347
      %vm354 = vcmask 64512
      %v355 = vsel %vm354, %v353, %v351
      %v356 = vpack.c.bf16 %v355, %v355
      %v357 = vld [vmem:[%s1] sm:$0xf]
      %v358 = vld [vmem:[%s1 + $0x4] sm:$0x3]
      %v359 = vld [vmem:[%s4] sm:$0x1]
      %v361 = vperm.slane %v359, 0
      %v365 = vunpack.c.l.b16 %v357
      %v366 = vunpack.c.l.b16 %v358
      %v367 = vpack.c.b16 %v366, %v365
      %vm368 = vcmask 97280
      %v370 = vsel %vm368, %v356, 0
      %vm372 = vcmask 1045504
      %v374 = vsel %vm372, %v367, 0
      %376 = vmatpush.bf16.msra.mxu0 0
      %377 = vmatpush.bf16.msra.mxu0 0
      %378 = vmatpush.bf16.msra.mxu0 0
      %379 = vmatpush.bf16.msra.mxu0 0
      %380 = vmatpush.bf16.msra.mxu0 0
      %381 = vmatpush.bf16.msra.mxu0 0
      %382 = vmatpush.bf16.msra.mxu0 0
      %383 = vmatpush.bf16.msra.mxu0 %v374
      %384 = vmatmul.bf16.gmra.mxu0 %v370
      %v385 = vpop.f32.mrf.mxu0
      %v386 = vadd.f32 %v361, %v385
      %v387 = vpop.f32.mrf.mxu0
      %388 = vdwg.mxu0
      %v389 = vmax.f32 %v386, 0.0
      %vm390 = vcmask 57344
      %vm391 = vsmask.f32 256
      %vm392 = vmand %vm390, %vm391
      %v393 = vld [vmem:[#allocation3] sm:$0x1]
      %v394 = vsel %vm392, 0, %v393
      %395 = vst [vmem:[#allocation3] sm:$0x1] %v394
      %vm396 = vsmask.f32 7938
      %vm397 = vmand %vm390, %vm396
      %v398 = vld [vmem:[#allocation3 + $0x4] sm:$0x1]
      %v399 = vsel %vm397, 0, %v398
      %400 = vst [vmem:[#allocation3 + $0x4] sm:$0x1] %v399
      %v401 = vpack.c.bf16 %v389, %v389
      %v403 = vshrl.u32 %v401, 16
      %v405 = vrot.slane %v403, 7
      %v406 = vshll.u32 %v401, 16
      %v408 = vor.u32 %v405, %v406
      %v409 = vrot.slane %v405, 4
      %vm412 = vcmask 60416
      %vm413 = vmand %vm412, %vm396
      %v414 = vld [vmem:[#allocation3] sm:$0xf]
      %v415 = vsel %vm413, %v408, %v414
      %416 = vst [vmem:[#allocation3] sm:$0xf] %v415
      %v417 = vld [vmem:[#allocation3 + $0x4] sm:$0x1]
      %v418 = vsel %vm392, %v409, %v417
      %419 = vst [vmem:[#allocation3 + $0x4] sm:$0x1] %v418
      %v420 = vld [vmem:[#allocation3] sm:$0xf]
      %v421 = vld [vmem:[#allocation3 + $0x4] sm:$0x1]
      %v422 = vld [vmem:[#allocation3] sm:$0xe]
      %v425 = vunpack.c.l.b16 %v420
      %v426 = vunpack.c.l.b16 %v421
      %v427 = vpack.c.b16 %v426, %v425
      %v429 = vshrl.u32 %v427, 16
      %v431 = vshll.u32 %v427, 16
      %v433 = vrot.slane %v431, 1
      %v434 = vor.u32 %v429, %v433
      %435 = vrot.lane.b32.xlu0 %v434, 8
      %v436 = vpop.permute.xlu0 %435
      %v438 = vunpack.c.l.b16 %v422
      %v439 = vpack.c.b16 %v426, %v438
      %v440 = vrot.slane %v439, 1
      %441 = vrot.lane.b32.xlu0 %v440, 16
      %v442 = vpop.permute.xlu0 %441
      %v445 = vsel %vm354, %v420, %v436
      %vm446 = vcmask 130048
      %v448 = vsel %vm446, %v445, %v442
      %v449 = vld [vmem:[%s2] sm:$0xf]
      %v450 = vld [vmem:[%s2 + $0x4] sm:$0xf]
      %v451 = vld [vmem:[%s2 + $0x8] sm:$0xf]
      %v452 = vld [vmem:[%s5] sm:$0x1]
      %v454 = vperm.slane %v452, 0
      %v459 = vunpack.c.l.b16 %v449
      %v460 = vunpack.c.l.b16 %v450
      %v461 = vunpack.c.l.b16 %v451
      %v462 = vpack.c.b16 %v460, %v459
      %v463 = vpack.c.b16 %v461, %v461
      %vm465 = vcmask 195584
      %v466 = vsel %vm465, %v448, 0
      %vm468 = vcmask 1043456
      %v470 = vsel %vm468, %v463, 0
      %472 = vmatpush.bf16.msra.mxu0 0
      %473 = vmatpush.bf16.msra.mxu0 0
      %474 = vmatpush.bf16.msra.mxu0 0
      %475 = vmatpush.bf16.msra.mxu0 0
      %476 = vmatpush.bf16.msra.mxu0 0
      %477 = vmatpush.bf16.msra.mxu0 0
      %478 = vmatpush.bf16.msra.mxu0 %v470
      %479 = vmatpush.bf16.msra.mxu0 %v462
      %480 = vmatmul.bf16.gmra.mxu0 %v466
      %v481 = vpop.f32.mrf.mxu0
      %v482 = vadd.f32 %v454, %v481
      %v483 = vpop.f32.mrf.mxu0
      %484 = vdwg.mxu0
      %v485 = vmax.f32 %v482, 0.0
      %vm486 = vcmask 58368
      %487 = vst.msk [vmem:[#allocation4] sm:$0x3] %vm486, 0
      %vm488 = vcmask 60418
      %489 = vst.msk [vmem:[#allocation4 + $0x4] sm:$0xc] %vm488, 0
      %v490 = vpack.c.bf16 %v485, %v485
      %v492 = vrot.slane %v490, 6
      %v493 = vrot.slane %v492, 4
      %496 = vst.msk [vmem:[#allocation4] sm:$0xc] %vm488, %v492
      %497 = vst.msk [vmem:[#allocation4 + $0x4] sm:$0x3] %vm486, %v493
      %v498 = vld [vmem:[#allocation4] sm:$0xf]
      %v499 = vld [vmem:[#allocation4] sm:$0xc]
      %v500 = vld [vmem:[#allocation4 + $0x4] sm:$0x3]
      %v501 = vld [vmem:[#allocation4 + $0x4] sm:$0xf]
      %v504 = vunpack.c.l.b16 %v499
      %v505 = vunpack.c.l.b16 %v500
      %v506 = vpack.c.b16 %v505, %v504
      %v507 = vrot.slane %v506, 2
      %508 = vrot.lane.b32.xlu0 %v507, 8
      %v509 = vpop.permute.xlu0 %508
      %v511 = vunpack.c.l.b16 %v501
      %v512 = vpack.c.b16 %v511, %v511
      %513 = vrot.lane.b32.xlu0 %v512, 16
      %v514 = vpop.permute.xlu0 %513
      %v517 = vsel %vm354, %v498, %v509
      %v519 = vsel %vm446, %v517, %v514
      %v520 = vld [vmem:[%s3] sm:$0xf]
      %v521 = vld [vmem:[%s3 + $0x4] sm:$0xf]
      %v522 = vld [vmem:[%s3 + $0x8] sm:$0xf]
      %v523 = vld [vmem:[%s6] sm:$0x1]
      %v525 = vperm.slane %v523, 0
      %v530 = vunpack.c.l.b16 %v520
      %v531 = vunpack.c.l.b16 %v521
      %v532 = vunpack.c.l.b16 %v522
      %v533 = vpack.c.b16 %v531, %v530
      %v534 = vpack.c.b16 %v532, %v532
      %v536 = vsel %vm465, %v519, 0
      %v539 = vsel %vm468, %v534, 0
      %541 = vmatpush.bf16.msra.mxu0 0
      %542 = vmatpush.bf16.msra.mxu0 0
      %543 = vmatpush.bf16.msra.mxu0 0
      %544 = vmatpush.bf16.msra.mxu0 0
      %545 = vmatpush.bf16.msra.mxu0 0
      %546 = vmatpush.bf16.msra.mxu0 0
      %547 = vmatpush.bf16.msra.mxu0 %v539
      %548 = vmatpush.bf16.msra.mxu0 %v533
      %549 = vmatmul.bf16.gmra.mxu0 %v536
      %v550 = vpop.f32.mrf.mxu0
      %v551 = vadd.f32 %v525, %v550
      %v552 = vpop.f32.mrf.mxu0
      %553 = vdwg.mxu0
      %v554 = vld [vmem:[%s341] ss:$2 sm:$0xff]
      %v555 = vpack.c.bf16 %v554, %v554
      %v556 = vld [vmem:[%s7] sm:$0x3]
      %v557 = vld [vmem:[%s8] sm:$0x1]
      %v559 = vperm.slane %v557, 0
      %v562 = vsel %vm337, %v555, 0
      %vm564 = vcmask 1041408
      %v566 = vsel %vm564, %v556, 0
      %568 = vmatpush.bf16.msra.mxu0 0
      %569 = vmatpush.bf16.msra.mxu0 0
      %570 = vmatpush.bf16.msra.mxu0 0
      %571 = vmatpush.bf16.msra.mxu0 0
      %572 = vmatpush.bf16.msra.mxu0 0
      %573 = vmatpush.bf16.msra.mxu0 0
      %574 = vmatpush.bf16.msra.mxu0 0
      %575 = vmatpush.bf16.msra.mxu0 %v566
      %576 = vmatmul.bf16.gmra.mxu0 %v562
      %v577 = vpop.f32.mrf.mxu0
      %v578 = vadd.f32 %v559, %v577
      %v579 = vpop.f32.mrf.mxu0
      %580 = vdwg.mxu0
      %v581 = vadd.f32 %v551, %v578
      %v582 = vmax.f32 %v581, 0.0
      %583 = vst.msk [vmem:[%s330] sm:$0xff] %vm354, %v582
      %p584 = scmp.lt.s32.totalorder %s20, 1
      %s585 = scalar_select %p584, %s20, 1
      %s586 = smul.addr %s585, 8
      %s587 = scalar_lea.vmem %s9, %s586
      // Predicated region
      $region57: #{residual_block_dilated.1} parent=55 // pred_check
        %p588 = pneg %p232
      $region58: #{residual_block_dilated.1} parent=55 // pred_check_branch
        %590 = sbr.rel (%p588) target = $region60
      $region59: #{residual_block_dilated.1} parent=55 // pred_region
        _
      $region60: #{residual_block_dilated.1} parent=55 // pred_fallthru
        _
    $region56: #{residual_block_dilated.1} parent=5 // pred_fallthru
      _
    %p591 = scmp.le.s32.totalorder 2, %s15
    // Predicated region
    $region61: #{residual_block_dilated.1} parent=5 // pred_check
      %p592 = pneg %p591
    $region62: #{residual_block_dilated.1} parent=5 // pred_check_branch
      %594 = sbr.rel (%p592) target = $region64
    $region63: #{residual_block_dilated.1} parent=5 // pred_region
      %s595 = ssub.s32 %s15, 2
      // Predicated region
      $region65: #{residual_block_dilated.1} parent=63 // pred_check
        %p596 = pneg %p238
      $region66: #{residual_block_dilated.1} parent=63 // pred_check_branch
        %598 = sbr.rel (%p596) target = $region68
      $region67: #{residual_block_dilated.1} parent=63 // pred_region
        %p599 = scmp.lt.s32.totalorder %s21, 1
        %s600 = scalar_select %p599, %s21, 1
        %s601 = smul.addr %s600, 8
        %s602 = scalar_lea.vmem %s9, %s601
      $region68: #{residual_block_dilated.1} parent=63 // pred_fallthru
        _
    $region64: #{residual_block_dilated.1} parent=5 // pred_fallthru
      _
  $region6: #{residual_block_dilated.1} parent=0 // loop_footer
    %s19 = sadd.s32 1, %s15
  $region7: #{residual_block_dilated.1} parent=0 // loop_footer_branch
    %14 = sbr.rel target = $region3
  $region8: #{residual_block_dilated.1} parent=0 // loop_exit
    _

</llo_original>
